<compile_context>
chip_gen: v6e
topology: v6e:2x2x1
jax: 0.10.0
libtpu: 0.0.40
codegen_flags: <defaults>
</compile_context>

<pallas_src>
import jax
import jax.numpy as jnp
import numpy as np
from jax.experimental import pallas as pl
from jax.experimental.pallas import tpu as pltpu


def _round_up(x, m):
    return ((x + m - 1) // m) * m


def _ceil_div(a, b):
    return -(-a // b)


# --------------------------------------------------------------------------- #
# Kernel
# --------------------------------------------------------------------------- #
def actor_critic_kernel(x_ref, w1_ref, w2_ref, w3_ref, b12_ref, b3m_ref, out_ref):
    w_dtype = w1_ref.dtype
    x = x_ref[...].astype(w_dtype)

    b12 = b12_ref[...]                   # (8, 2H) f32; rows 0,1 used
    b1 = b12[0:1, :]
    b2 = b12[1:2, :]
    b3m = b3m_ref[...]                   # (8, OUT_W) f32; row 0 = bias3, row 1 = tanh mask
    b3 = b3m[0:1, :]
    mask = b3m[1:2, :]

    # Layer 1 (actor || critic fused along output dim), ReLU.  f32 accumulate,
    # f32 elementwise; cast only the next matmul operand to the weight dtype.
    h1 = jnp.dot(x, w1_ref[...], preferred_element_type=jnp.float32) + b1
    h1 = jnp.maximum(h1, 0.0).astype(w_dtype)

    # Layer 2 (block-diagonal fused weight), ReLU.
    h2 = jnp.dot(h1, w2_ref[...], preferred_element_type=jnp.float32) + b2
    h2 = jnp.maximum(h2, 0.0).astype(w_dtype)

    # Layer 3 -> narrow packed output [mu_raw | value | pad].
    y3 = jnp.dot(h2, w3_ref[...], preferred_element_type=jnp.float32) + b3

    # tanh only on mu columns, via precomputed {1,0} mask (no iota / int compare).
    out_ref[...] = (y3 + mask * (jnp.tanh(y3) - y3)).astype(out_ref.dtype)


# --------------------------------------------------------------------------- #
# Tiling choice
# --------------------------------------------------------------------------- #
def _choose_tiling(B, block_batch):
    """Pick (TB, Bp, n_tiles): TB multiple of 8, >=2 even tiles when B >= 16,
    last tile mostly full."""
    block_batch = max(8, int(block_batch))
    n_tiles = max(1, _ceil_div(B, block_batch))
    if B >= 16:
        n_tiles = max(n_tiles, 2)          # feed both v7x TensorCores
    if n_tiles > 1 and n_tiles % 2:
        n_tiles += 1                       # even step count per core
    TB = _round_up(_ceil_div(B, n_tiles), 8)
    Bp = n_tiles * TB
    return TB, Bp, n_tiles


# --------------------------------------------------------------------------- #
# Wrapper
# --------------------------------------------------------------------------- #
def actor_critic_forward(states, packed, *, action_size, value_size, block_batch=2048):
    """states: (B, state_size) f32.  Returns (mu, std, values)."""
    B, S = states.shape
    w1, w2, w3 = packed["w1"], packed["w2"], packed["w3"]
    b12, b3m = packed["b12"], packed["b3m"]
    H2 = w1.shape[1]            # fused hidden width (2 * hidden)
    OUT_W = w3.shape[1]         # narrow packed output width (>= action+value)

    TB, Bp, n_tiles = _choose_tiling(B, block_batch)
    if Bp != B:
        states = jnp.pad(states, ((0, Bp - B), (0, 0)))

    out = pl.pallas_call(
        actor_critic_kernel,
        out_shape=jax.ShapeDtypeStruct((Bp, OUT_W), jnp.float32),
        grid=(n_tiles,),
        in_specs=[
            pl.BlockSpec((TB, S), lambda i: (i, 0)),          # states (tiled over batch)
            pl.BlockSpec((S, H2), lambda i: (0, 0)),          # W1 (resident)
            pl.BlockSpec((H2, H2), lambda i: (0, 0)),         # W2 (resident)
            pl.BlockSpec((H2, OUT_W), lambda i: (0, 0)),      # W3 (resident, narrow)
            pl.BlockSpec((8, H2), lambda i: (0, 0)),          # biases L1/L2 (resident)
            pl.BlockSpec((8, OUT_W), lambda i: (0, 0)),       # bias L3 + tanh mask
        ],
        out_specs=pl.BlockSpec((TB, OUT_W), lambda i: (i, 0)),
        compiler_params=pltpu.CompilerParams(
            dimension_semantics=("parallel",),
            vmem_limit_bytes=32 * 1024 * 1024,
        ),
    )(states, w1, w2, w3, b12, b3m)

    mu = out[:B, :action_size]
    values = out[:B, action_size:action_size + value_size]
    # std is batch-independent: compute/broadcast outside the kernel.
    std = jnp.broadcast_to(jnp.exp(packed["log_std"]), mu.shape)
    return mu, std, values


# --------------------------------------------------------------------------- #
# Parameter init (torch-style, per-layer) and packing (fused, kernel-side)
# --------------------------------------------------------------------------- #
def init_params(key, state_size, action_size, value_size=1, hidden_size=64, std=0.0):
    """Per-layer params; every Linear weight stored transposed as (in, out)."""
    keys = jax.random.split(key, 12)

    def lin(kw, kb, fan_in, fan_out):
        bound = 1.0 / np.sqrt(fan_in)
        w = jax.random.uniform(kw, (fan_in, fan_out), jnp.float32, -bound, bound)
        b = jax.random.uniform(kb, (1, fan_out), jnp.float32, -bound, bound)
        return w, b

    aw1, ab1 = lin(keys[0], keys[1], state_size, hidden_size)
    aw2, ab2 = lin(keys[2], keys[3], hidden_size, hidden_size)
    aw3, ab3 = lin(keys[4], keys[5], hidden_size, action_size)
    cw1, cb1 = lin(keys[6], keys[7], state_size, hidden_size)
    cw2, cb2 = lin(keys[8], keys[9], hidden_size, hidden_size)
    cw3, cb3 = lin(keys[10], keys[11], hidden_size, value_size)
    log_std = jnp.ones((1, action_size), jnp.float32) * std

    return dict(
        aw1=aw1, ab1=ab1, aw2=aw2, ab2=ab2, aw3=aw3, ab3=ab3,
        cw1=cw1, cb1=cb1, cw2=cw2, cb2=cb2, cw3=cw3, cb3=cb3,
        log_std=log_std,
    )


def pack_params(p, *, action_size, value_size, weights_dtype=jnp.bfloat16):
    """Fuse actor+critic per-layer weights into lane-dense kernel operands.

    weights_dtype=jnp.bfloat16 (default) halves weight bandwidth and boosts MXU
    throughput; accumulation / biases / activations stay f32. Pass
    weights_dtype=jnp.float32 for exact parity with the PyTorch module.
    """
    H = p["aw1"].shape[1]
    H2 = 2 * H
    OUT_W = _round_up(action_size + value_size, 8)   # narrow packed output

    # Layer 1: concat along output dim -> (S, 2H).
    w1 = jnp.concatenate([p["aw1"], p["cw1"]], axis=1)

    # Layer 2: block-diagonal -> (2H, 2H).
    w2 = jnp.zeros((H2, H2), jnp.float32)
    w2 = w2.at[:H, :H].set(p["aw2"]).at[H:, H:].set(p["cw2"])

    # Layer 3: packed output columns [mu | value | pad] -> (2H, OUT_W).
    w3 = jnp.zeros((H2, OUT_W), jnp.float32)
    w3 = w3.at[:H, :action_size].set(p["aw3"])
    w3 = w3.at[H:, action_size:action_size + value_size].set(p["cw3"])

    # Layer-1/2 biases packed into one (8, 2H) array (rows 0,1).
    b12 = jnp.zeros((8, H2), jnp.float32)
    b12 = b12.at[0, :H].set(p["ab1"][0]).at[0, H:].set(p["cb1"][0])
    b12 = b12.at[1, :H].set(p["ab2"][0]).at[1, H:].set(p["cb2"][0])

    # Layer-3 bias (row 0) + tanh column mask (row 1) in one (8, OUT_W) array.
    b3m = jnp.zeros((8, OUT_W), jnp.float32)
    b3m = b3m.at[0, :action_size].set(p["ab3"][0])
    b3m = b3m.at[0, action_size:action_size + value_size].set(p["cb3"][0])
    b3m = b3m.at[1, :action_size].set(1.0)

    return dict(
        w1=w1.astype(weights_dtype),
        w2=w2.astype(weights_dtype),
        w3=w3.astype(weights_dtype),
        b12=b12,                         # biases stay f32 (added post-accumulation)
        b3m=b3m,
        log_std=p["log_std"],
    )


# --------------------------------------------------------------------------- #
# Pure-JAX reference (unfused, matches the PyTorch module)
# --------------------------------------------------------------------------- #
def reference_forward(states, p):
    relu = lambda z: jnp.maximum(z, 0.0)
    h = relu(states @ p["cw1"] + p["cb1"])
    h = relu(h @ p["cw2"] + p["cb2"])
    values = h @ p["cw3"] + p["cb3"]
    a = relu(states @ p["aw1"] + p["ab1"])
    a = relu(a @ p["aw2"] + p["ab2"])
    mu = jnp.tanh(a @ p["aw3"] + p["ab3"])
    std = jnp.broadcast_to(jnp.exp(p["log_std"]), mu.shape)
    return mu, std, values


if __name__ == "__main__":
    state_size, action_size, value_size, hidden_size = 16, 4, 1, 64

    key = jax.random.PRNGKey(0)
    k_params, k_states = jax.random.split(key)
    raw = init_params(k_params, state_size, action_size, value_size, hidden_size, std=0.0)
    packed_f32 = pack_params(raw, action_size=action_size, value_size=value_size,
                             weights_dtype=jnp.float32)
    packed_bf16 = pack_params(raw, action_size=action_size, value_size=value_size,
                              weights_dtype=jnp.bfloat16)

    def run_and_check(batch, packed, atol, rtol):
        states = jax.random.normal(jax.random.fold_in(k_states, batch),
                                   (batch, state_size), jnp.float32)
        mu, std, values = jax.block_until_ready(
            actor_critic_forward(states, packed,
                                 action_size=action_size, value_size=value_size)
        )
        mu_r, std_r, values_r = reference_forward(states, raw)
        assert np.allclose(np.asarray(mu), np.asarray(mu_r), atol=atol, rtol=rtol)
        assert np.allclose(np.asarray(std), np.asarray(std_r), atol=atol, rtol=rtol)
        assert np.allclose(np.asarray(values), np.asarray(values_r), atol=atol, rtol=rtol)

    # Small single-tile run, exact f32 weights.
    run_and_check(8, packed_f32, atol=1e-5, rtol=1e-5)
    # Multi-tile run (grid=(2,), padded batch), exact f32 weights.
    run_and_check(24, packed_f32, atol=1e-5, rtol=1e-5)
    # Default bf16-weight fast path (f32 accumulation), looser tolerance.
    run_and_check(8, packed_bf16, atol=5e-2, rtol=5e-2)

    print("KERNEL_OK")
</pallas_src>

<mosaic_0001>
module attributes {stable_mosaic.version = 11 : i64} {
  func.func @actor_critic_kernel(%arg0: i32, %arg1: memref<8x16xf32, #tpu.memory_space<vmem>>, %arg2: memref<16x128xf32, #tpu.memory_space<vmem>>, %arg3: memref<128x128xf32, #tpu.memory_space<vmem>>, %arg4: memref<128x8xf32, #tpu.memory_space<vmem>>, %arg5: memref<8x128xf32, #tpu.memory_space<vmem>>, %arg6: memref<8x8xf32, #tpu.memory_space<vmem>>, %arg7: memref<8x8xf32, #tpu.memory_space<vmem>>) attributes {dimension_semantics = [#tpu.dimension_semantics<parallel>], iteration_bounds = array<i64: 1>, scalar_prefetch = 0 : i64, scratch_operands = 0 : i64, tpu.core_type = #tpu.core_type<tc>, window_params = [{transform_indices = @transform_0, window_bounds = array<i64: 8, 16>}, {pipeline_mode = #tpu.pipeline_mode<synchronous>, transform_indices = @transform_1, window_bounds = array<i64: 16, 128>}, {pipeline_mode = #tpu.pipeline_mode<synchronous>, transform_indices = @transform_2, window_bounds = array<i64: 128, 128>}, {pipeline_mode = #tpu.pipeline_mode<synchronous>, transform_indices = @transform_3, window_bounds = array<i64: 128, 8>}, {pipeline_mode = #tpu.pipeline_mode<synchronous>, transform_indices = @transform_4, window_bounds = array<i64: 8, 128>}, {pipeline_mode = #tpu.pipeline_mode<synchronous>, transform_indices = @transform_5, window_bounds = array<i64: 8, 8>}, {transform_indices = @transform_6, window_bounds = array<i64: 8, 8>}]} {
    %c0 = arith.constant 0 : index
    %c0_0 = arith.constant 0 : index
    %0 = vector.load %arg1[%c0, %c0_0] : memref<8x16xf32, #tpu.memory_space<vmem>>, vector<8x16xf32>
    %c0_1 = arith.constant 0 : index
    %c0_2 = arith.constant 0 : index
    %1 = vector.load %arg5[%c0_1, %c0_2] : memref<8x128xf32, #tpu.memory_space<vmem>>, vector<8x128xf32>
    %2 = vector.extract_strided_slice %1 {offsets = [0, 0], sizes = [1, 128], strides = [1, 1]} : vector<8x128xf32> to vector<1x128xf32>
    %3 = vector.extract_strided_slice %1 {offsets = [1, 0], sizes = [1, 128], strides = [1, 1]} : vector<8x128xf32> to vector<1x128xf32>
    %c0_3 = arith.constant 0 : index
    %c0_4 = arith.constant 0 : index
    %4 = vector.load %arg6[%c0_3, %c0_4] : memref<8x8xf32, #tpu.memory_space<vmem>>, vector<8x8xf32>
    %5 = vector.extract_strided_slice %4 {offsets = [0, 0], sizes = [1, 8], strides = [1, 1]} : vector<8x8xf32> to vector<1x8xf32>
    %6 = vector.extract_strided_slice %4 {offsets = [1, 0], sizes = [1, 8], strides = [1, 1]} : vector<8x8xf32> to vector<1x8xf32>
    %c0_5 = arith.constant 0 : index
    %c0_6 = arith.constant 0 : index
    %7 = vector.load %arg2[%c0_5, %c0_6] : memref<16x128xf32, #tpu.memory_space<vmem>>, vector<16x128xf32>
    %cst = arith.constant dense<0.000000e+00> : vector<8x128xf32>
    %8 = tpu.matmul %0, %7, %cst {dimension_numbers = #tpu.dot_dimension_numbers<[1], [0], [0], [1], [0, 0, 1, 1], [], []>} : vector<8x16xf32>, vector<16x128xf32>, vector<8x128xf32> -> vector<8x128xf32>
    %9 = vector.broadcast %2 : vector<1x128xf32> to vector<8x128xf32>
    %10 = arith.addf %8, %9 : vector<8x128xf32>
    %cst_7 = arith.constant 0.000000e+00 : f32
    %11 = vector.broadcast %cst_7 : f32 to vector<8x128xf32>
    %12 = arith.maximumf %10, %11 : vector<8x128xf32>
    %c0_8 = arith.constant 0 : index
    %c0_9 = arith.constant 0 : index
    %13 = vector.load %arg3[%c0_8, %c0_9] : memref<128x128xf32, #tpu.memory_space<vmem>>, vector<128x128xf32>
    %cst_10 = arith.constant dense<0.000000e+00> : vector<8x128xf32>
    %14 = tpu.matmul %12, %13, %cst_10 {dimension_numbers = #tpu.dot_dimension_numbers<[1], [0], [0], [1], [0, 0, 1, 1], [], []>} : vector<8x128xf32>, vector<128x128xf32>, vector<8x128xf32> -> vector<8x128xf32>
    %15 = vector.broadcast %3 : vector<1x128xf32> to vector<8x128xf32>
    %16 = arith.addf %14, %15 : vector<8x128xf32>
    %cst_11 = arith.constant 0.000000e+00 : f32
    %17 = vector.broadcast %cst_11 : f32 to vector<8x128xf32>
    %18 = arith.maximumf %16, %17 : vector<8x128xf32>
    %c0_12 = arith.constant 0 : index
    %c0_13 = arith.constant 0 : index
    %19 = vector.load %arg4[%c0_12, %c0_13] : memref<128x8xf32, #tpu.memory_space<vmem>>, vector<128x8xf32>
    %cst_14 = arith.constant dense<0.000000e+00> : vector<8x8xf32>
    %20 = tpu.matmul %18, %19, %cst_14 {dimension_numbers = #tpu.dot_dimension_numbers<[1], [0], [0], [1], [0, 0, 1, 1], [], []>} : vector<8x128xf32>, vector<128x8xf32>, vector<8x8xf32> -> vector<8x8xf32>
    %21 = vector.broadcast %5 : vector<1x8xf32> to vector<8x8xf32>
    %22 = arith.addf %20, %21 : vector<8x8xf32>
    %23 = math.tanh %22 : vector<8x8xf32>
    %24 = arith.subf %23, %22 : vector<8x8xf32>
    %25 = vector.broadcast %6 : vector<1x8xf32> to vector<8x8xf32>
    %26 = arith.mulf %25, %24 : vector<8x8xf32>
    %27 = arith.addf %22, %26 : vector<8x8xf32>
    %c0_15 = arith.constant 0 : index
    %c0_16 = arith.constant 0 : index
    %28 = vector.load %arg7[%c0_15, %c0_16] : memref<8x8xf32, #tpu.memory_space<vmem>>, vector<8x8xf32>
    tpu.vector_store %arg7[%c0_15, %c0_16], %27 {strides = array<i32>} : memref<8x8xf32, #tpu.memory_space<vmem>>, vector<8x8xf32>,
    return
  }
  func.func @transform_0(%arg0: i32) -> (i32, i32) {
    %c0_i32 = arith.constant 0 : i32
    %c0_i32_0 = arith.constant 0 : i32
    return %arg0, %c0_i32 : i32, i32
  }
  func.func @transform_1(%arg0: i32) -> (i32, i32) {
    %c0_i32 = arith.constant 0 : i32
    %c0_i32_0 = arith.constant 0 : i32
    %c0_i32_1 = arith.constant 0 : i32
    return %c0_i32, %c0_i32_0 : i32, i32
  }
  func.func @transform_2(%arg0: i32) -> (i32, i32) {
    %c0_i32 = arith.constant 0 : i32
    %c0_i32_0 = arith.constant 0 : i32
    %c0_i32_1 = arith.constant 0 : i32
    return %c0_i32, %c0_i32_0 : i32, i32
  }
  func.func @transform_3(%arg0: i32) -> (i32, i32) {
    %c0_i32 = arith.constant 0 : i32
    %c0_i32_0 = arith.constant 0 : i32
    %c0_i32_1 = arith.constant 0 : i32
    return %c0_i32, %c0_i32_0 : i32, i32
  }
  func.func @transform_4(%arg0: i32) -> (i32, i32) {
    %c0_i32 = arith.constant 0 : i32
    %c0_i32_0 = arith.constant 0 : i32
    %c0_i32_1 = arith.constant 0 : i32
    return %c0_i32, %c0_i32_0 : i32, i32
  }
  func.func @transform_5(%arg0: i32) -> (i32, i32) {
    %c0_i32 = arith.constant 0 : i32
    %c0_i32_0 = arith.constant 0 : i32
    %c0_i32_1 = arith.constant 0 : i32
    return %c0_i32, %c0_i32_0 : i32, i32
  }
  func.func @transform_6(%arg0: i32) -> (i32, i32) {
    %c0_i32 = arith.constant 0 : i32
    %c0_i32_0 = arith.constant 0 : i32
    return %arg0, %c0_i32 : i32, i32
  }
}

</mosaic_0001>

<llo_original>
// kernel: tpu_custom_call.1
$region0: #{tpu_custom_call.1}
  #allocation0 [shape = 'u32[]', space=smem, size = 0x4, offset = 0x4, fixed_abs, tag = 'smem constant byte address 0x4 - core index']
  #allocation1 [shape = 'u32[144,128]{1,0:T(1,128)}', space=vmem, size = 0x12000, scoped, tag = 'internal scratch']
  %s0 = inlined_call_operand.vmem [shape: f32[8,16], index: 0, kind: input, shape index: {}]
  %s1 = inlined_call_operand.hbm [shape: f32[16,128], index: 1, kind: input, shape index: {}]
  %s2 = inlined_call_operand.vmem [shape: f32[128,128], index: 2, kind: input, shape index: {}]
  %s3 = inlined_call_operand.vmem [shape: f32[128,8], index: 3, kind: input, shape index: {}]
  %s4 = inlined_call_operand.hbm [shape: f32[8,128], index: 4, kind: input, shape index: {}]
  %s5 = inlined_call_operand.vmem [shape: f32[8,8], index: 5, kind: input, shape index: {}]
  %s6 = inlined_call_operand.hbm [shape: f32[8,8], index: 6, kind: output, shape index: {}]
  %s7 = sld [smem:[#allocation0]]
  $region42: #{tpu_custom_call.1} parent=0
    _
  %s9 = ssub.s32 1, %s7
  %s10 = scalar_select 0, %s9, %s7
  $region1: #{tpu_custom_call.1} parent=0
    #allocation2 [shape = 'u8[8192]{0}', space=vmem, size = 0x2000, scoped, tag = 'input window, operand 1, single buffered']
    #allocation3 [shape = 's32[1]{0}', space=sflag, size = 0x4, scoped, tag = 'scoped memory for tpu_custom_call.1']
    #allocation4 [shape = 's32[1]{0}', space=sflag, size = 0x4, scoped, tag = 'scoped memory for tpu_custom_call.1']
    #allocation5 [shape = 'u8[4096]{0}', space=vmem, size = 0x1000, scoped, tag = 'input window, operand 4, single buffered']
    #allocation6 [shape = 's32[1]{0}', space=sflag, size = 0x4, scoped, tag = 'scoped memory for tpu_custom_call.1']
    #allocation7 [shape = 'u8[4096]{0}', space=vmem, size = 0x1000, scoped, tag = 'output window, operand 0, single buffered']
    %11 = vsyncpa [#allocation3], 0
    %12 = vsyncpa [#allocation6], 0
    %13 = vsyncpa [#allocation4], 0
    // Predicated region
    $region2: #{tpu_custom_call.1} parent=1 // pred_check
      _
    $region3: #{tpu_custom_call.1} parent=1 // pred_check_branch
      %15 = sbr.rel (0) target = $region5
    $region4: #{tpu_custom_call.1} parent=1 // pred_region
      _
    $region5: #{tpu_custom_call.1} parent=1 // pred_fallthru
      _
    // Predicated region
    $region6: #{tpu_custom_call.1} parent=1 // pred_check
      _
    $region7: #{tpu_custom_call.1} parent=1 // pred_check_branch
      %17 = sbr.rel (0) target = $region9
    $region8: #{tpu_custom_call.1} parent=1 // pred_region
      %s19 = ssub.s32 256, 256
      %20 = vsyncadd [#allocation3], %s19
      %s21 = sshll.u32 [#allocation2], 4
      %s22 = int_to_ptr.vmem [resolvable:$true] %s21
      %27 = dma.hbm_to_vmem [thread:$0]  %s1, 256, %s22, [#allocation3], 128, 128, 8
    $region9: #{tpu_custom_call.1} parent=1 // pred_fallthru
      _
    // Predicated region
    $region10: #{tpu_custom_call.1} parent=1 // pred_check
      _
    $region11: #{tpu_custom_call.1} parent=1 // pred_check_branch
      %29 = sbr.rel (0) target = $region13
    $region12: #{tpu_custom_call.1} parent=1 // pred_region
      _
    $region13: #{tpu_custom_call.1} parent=1 // pred_fallthru
      _
    // Predicated region
    $region14: #{tpu_custom_call.1} parent=1 // pred_check
      _
    $region15: #{tpu_custom_call.1} parent=1 // pred_check_branch
      %31 = sbr.rel (0) target = $region17
    $region16: #{tpu_custom_call.1} parent=1 // pred_region
      _
    $region17: #{tpu_custom_call.1} parent=1 // pred_fallthru
      _
    // Predicated region
    $region18: #{tpu_custom_call.1} parent=1 // pred_check
      _
    $region19: #{tpu_custom_call.1} parent=1 // pred_check_branch
      %33 = sbr.rel (0) target = $region21
    $region20: #{tpu_custom_call.1} parent=1 // pred_region
      %s35 = ssub.s32 128, 128
      %36 = vsyncadd [#allocation6], %s35
      %s38 = sshll.u32 [#allocation5], 4
      %s39 = int_to_ptr.vmem [resolvable:$true] %s38
      %41 = dma.hbm_to_vmem [thread:$0]  %s4, 128, %s39, [#allocation6]
    $region21: #{tpu_custom_call.1} parent=1 // pred_fallthru
      _
    // Predicated region
    $region22: #{tpu_custom_call.1} parent=1 // pred_check
      _
    $region23: #{tpu_custom_call.1} parent=1 // pred_check_branch
      %43 = sbr.rel (0) target = $region25
    $region24: #{tpu_custom_call.1} parent=1 // pred_region
      _
    $region25: #{tpu_custom_call.1} parent=1 // pred_fallthru
      _
    // Predicated region
    $region26: #{tpu_custom_call.1} parent=1 // pred_check
      _
    $region27: #{tpu_custom_call.1} parent=1 // pred_check_branch
      %45 = sbr.rel (0) target = $region29
    $region28: #{tpu_custom_call.1} parent=1 // pred_region
      %46 = dma.done [#allocation3], 256
    $region29: #{tpu_custom_call.1} parent=1 // pred_fallthru
      _
    // Predicated region
    $region30: #{tpu_custom_call.1} parent=1 // pred_check
      _
    $region31: #{tpu_custom_call.1} parent=1 // pred_check_branch
      %48 = sbr.rel (0) target = $region33
    $region32: #{tpu_custom_call.1} parent=1 // pred_region
      %49 = dma.done [#allocation6], 128
    $region33: #{tpu_custom_call.1} parent=1 // pred_fallthru
      _
    %v50 = vld [vmem:[%s0] sm:$0xff]
    %v51 = vld [vmem:[#allocation5] sm:$0xff]
    %v52 = vld [vmem:[%s5] sm:$0xff]
    %v53 = vld [vmem:[#allocation2] sm:$0xff]
    %v54 = vld [vmem:[#allocation2 + $0x8] sm:$0xff]
    %v55 = vlaneseq
    %v56 = vshrl.u32 %v55, 7
    %v57 = vsub.s32 0, %v56
    %v58 = vrot.slane %v51, %v57
    %vm59 = vcmask 130048
    %v61 = vsel %vm59, %v50, 0
    %63 = vmatprep.subr.mxu0 0.0
    %64 = vmatpush1.msra.mxu0 0.0
    %65 = vmatprep.subr.mxu0 0.0
    %66 = vmatpush1.msra.mxu0 0.0
    %67 = vmatprep.subr.mxu0 0.0
    %68 = vmatpush1.msra.mxu0 0.0
    %69 = vmatprep.subr.mxu0 0.0
    %70 = vmatpush1.msra.mxu0 0.0
    %71 = vmatprep.subr.mxu0 0.0
    %72 = vmatpush1.msra.mxu0 0.0
    %73 = vmatprep.subr.mxu0 0.0
    %74 = vmatpush1.msra.mxu0 0.0
    %75 = vmatprep.subr.mxu0 0.0
    %76 = vmatpush1.msra.mxu0 0.0
    %77 = vmatprep.subr.mxu0 0.0
    %78 = vmatpush1.msra.mxu0 0.0
    %79 = vmatprep.subr.mxu0 0.0
    %80 = vmatpush1.msra.mxu0 0.0
    %81 = vmatprep.subr.mxu0 0.0
    %82 = vmatpush1.msra.mxu0 0.0
    %83 = vmatprep.subr.mxu0 0.0
    %84 = vmatpush1.msra.mxu0 0.0
    %85 = vmatprep.subr.mxu0 0.0
    %86 = vmatpush1.msra.mxu0 0.0
    %87 = vmatprep.subr.mxu0 0.0
    %88 = vmatpush1.msra.mxu0 0.0
    %89 = vmatprep.subr.mxu0 0.0
    %90 = vmatpush1.msra.mxu0 0.0
    %91 = vmatprep.subr.mxu0 0.0
    %92 = vmatpush1.msra.mxu0 %v54
    %93 = vmatprep.subr.mxu0 0.0
    %94 = vmatpush1.msra.mxu0 %v53
    %95 = vmatprep.subr.mxu0 0.0
    %96 = vmatpush2.msra.mxu0 0.0
    %97 = vmatprep.subr.mxu0 0.0
    %98 = vmatpush2.msra.mxu0 0.0
    %99 = vmatprep.subr.mxu0 0.0
    %100 = vmatpush2.msra.mxu0 0.0
    %101 = vmatprep.subr.mxu0 0.0
    %102 = vmatpush2.msra.mxu0 0.0
    %103 = vmatprep.subr.mxu0 0.0
    %104 = vmatpush2.msra.mxu0 0.0
    %105 = vmatprep.subr.mxu0 0.0
    %106 = vmatpush2.msra.mxu0 0.0
    %107 = vmatprep.subr.mxu0 0.0
    %108 = vmatpush2.msra.mxu0 0.0
    %109 = vmatprep.subr.mxu0 0.0
    %110 = vmatpush2.msra.mxu0 0.0
    %111 = vmatprep.subr.mxu0 0.0
    %112 = vmatpush2.msra.mxu0 0.0
    %113 = vmatprep.subr.mxu0 0.0
    %114 = vmatpush2.msra.mxu0 0.0
    %115 = vmatprep.subr.mxu0 0.0
    %116 = vmatpush2.msra.mxu0 0.0
    %117 = vmatprep.subr.mxu0 0.0
    %118 = vmatpush2.msra.mxu0 0.0
    %119 = vmatprep.subr.mxu0 0.0
    %120 = vmatpush2.msra.mxu0 0.0
    %121 = vmatprep.subr.mxu0 0.0
    %122 = vmatpush2.msra.mxu0 0.0
    %123 = vmatprep.subr.mxu0 0.0
    %124 = vmatpush2.msra.mxu0 0.0
    %125 = vmatprep.subr.mxu0 0.0
    %126 = vmatpush2.msra.mxu0 0.0
    %127 = vmatprep.mubr.f32.mxu0 0.0
    %128 = vmatmul.mubr.f32.gmra.mxu0 %v61
    %v129 = vpop.f32.mrf.mxu0
    %v130 = vadd.f32 %v58, %v129
    %v131 = vpop.f32.mrf.mxu0
    %132 = vdwg.mxu0
    %v133 = vmax.f32 %v130, 0.0
    %v134 = vld [vmem:[%s2] sm:$0xff]
    %v135 = vld [vmem:[%s2 + $0x8] sm:$0xff]
    %v136 = vld [vmem:[%s2 + $0x10] sm:$0xff]
    %v137 = vld [vmem:[%s2 + $0x18] sm:$0xff]
    %v138 = vld [vmem:[%s2 + $0x20] sm:$0xff]
    %v139 = vld [vmem:[%s2 + $0x28] sm:$0xff]
    %v140 = vld [vmem:[%s2 + $0x30] sm:$0xff]
    %v141 = vld [vmem:[%s2 + $0x38] sm:$0xff]
    %v142 = vld [vmem:[%s2 + $0x40] sm:$0xff]
    %v143 = vld [vmem:[%s2 + $0x48] sm:$0xff]
    %v144 = vld [vmem:[%s2 + $0x50] sm:$0xff]
    %v145 = vld [vmem:[%s2 + $0x58] sm:$0xff]
    %v146 = vld [vmem:[%s2 + $0x60] sm:$0xff]
    %v147 = vld [vmem:[%s2 + $0x68] sm:$0xff]
    %v148 = vld [vmem:[%s2 + $0x70] sm:$0xff]
    %v149 = vld [vmem:[%s2 + $0x78] sm:$0xff]
    %v150 = vlaneseq
    %v151 = vshrl.u32 %v150, 7
    %v152 = vsub.s32 1, %v151
    %v153 = vrot.slane %v51, %v152
    %154 = vmatprep.subr.mxu0 0.0
    %155 = vmatpush1.msra.mxu0 %v149
    %156 = vmatprep.subr.mxu0 0.0
    %157 = vmatpush1.msra.mxu0 %v148
    %158 = vmatprep.subr.mxu0 0.0
    %159 = vmatpush1.msra.mxu0 %v147
    %160 = vmatprep.subr.mxu0 0.0
    %161 = vmatpush1.msra.mxu0 %v146
    %162 = vmatprep.subr.mxu0 0.0
    %163 = vmatpush1.msra.mxu0 %v145
    %164 = vmatprep.subr.mxu0 0.0
    %165 = vmatpush1.msra.mxu0 %v144
    %166 = vmatprep.subr.mxu0 0.0
    %167 = vmatpush1.msra.mxu0 %v143
    %168 = vmatprep.subr.mxu0 0.0
    %169 = vmatpush1.msra.mxu0 %v142
    %170 = vmatprep.subr.mxu0 0.0
    %171 = vmatpush1.msra.mxu0 %v141
    %172 = vmatprep.subr.mxu0 0.0
    %173 = vmatpush1.msra.mxu0 %v140
    %174 = vmatprep.subr.mxu0 0.0
    %175 = vmatpush1.msra.mxu0 %v139
    %176 = vmatprep.subr.mxu0 0.0
    %177 = vmatpush1.msra.mxu0 %v138
    %178 = vmatprep.subr.mxu0 0.0
    %179 = vmatpush1.msra.mxu0 %v137
    %180 = vmatprep.subr.mxu0 0.0
    %181 = vmatpush1.msra.mxu0 %v136
    %182 = vmatprep.subr.mxu0 0.0
    %183 = vmatpush1.msra.mxu0 %v135
    %184 = vmatprep.subr.mxu0 0.0
    %185 = vmatpush1.msra.mxu0 %v134
    %186 = vmatprep.subr.mxu0 0.0
    %187 = vmatpush2.msra.mxu0 0.0
    %188 = vmatprep.subr.mxu0 0.0
    %189 = vmatpush2.msra.mxu0 0.0
    %190 = vmatprep.subr.mxu0 0.0
    %191 = vmatpush2.msra.mxu0 0.0
    %192 = vmatprep.subr.mxu0 0.0
    %193 = vmatpush2.msra.mxu0 0.0
    %194 = vmatprep.subr.mxu0 0.0
    %195 = vmatpush2.msra.mxu0 0.0
    %196 = vmatprep.subr.mxu0 0.0
    %197 = vmatpush2.msra.mxu0 0.0
    %198 = vmatprep.subr.mxu0 0.0
    %199 = vmatpush2.msra.mxu0 0.0
    %200 = vmatprep.subr.mxu0 0.0
    %201 = vmatpush2.msra.mxu0 0.0
    %202 = vmatprep.subr.mxu0 0.0
    %203 = vmatpush2.msra.mxu0 0.0
    %204 = vmatprep.subr.mxu0 0.0
    %205 = vmatpush2.msra.mxu0 0.0
    %206 = vmatprep.subr.mxu0 0.0
    %207 = vmatpush2.msra.mxu0 0.0
    %208 = vmatprep.subr.mxu0 0.0
    %209 = vmatpush2.msra.mxu0 0.0
    %210 = vmatprep.subr.mxu0 0.0
    %211 = vmatpush2.msra.mxu0 0.0
    %212 = vmatprep.subr.mxu0 0.0
    %213 = vmatpush2.msra.mxu0 0.0
    %214 = vmatprep.subr.mxu0 0.0
    %215 = vmatpush2.msra.mxu0 0.0
    %216 = vmatprep.subr.mxu0 0.0
    %217 = vmatpush2.msra.mxu0 0.0
    %218 = vmatprep.mubr.f32.mxu0 0.0
    %219 = vmatmul.mubr.f32.gmra.mxu0 %v133
    %v220 = vpop.f32.mrf.mxu0
    %v221 = vadd.f32 %v153, %v220
    %v222 = vpop.f32.mrf.mxu0
    %223 = vdwg.mxu0
    %v224 = vmax.f32 %v221, 0.0
    %v225 = vld [vmem:[%s3] sm:$0xff]
    %v226 = vld [vmem:[%s3 + $0x8] sm:$0xff]
    %v227 = vld [vmem:[%s3 + $0x10] sm:$0xff]
    %v228 = vld [vmem:[%s3 + $0x18] sm:$0xff]
    %v229 = vld [vmem:[%s3 + $0x20] sm:$0xff]
    %v230 = vld [vmem:[%s3 + $0x28] sm:$0xff]
    %v231 = vld [vmem:[%s3 + $0x30] sm:$0xff]
    %v232 = vld [vmem:[%s3 + $0x38] sm:$0xff]
    %v233 = vld [vmem:[%s3 + $0x40] sm:$0xff]
    %v234 = vld [vmem:[%s3 + $0x48] sm:$0xff]
    %v235 = vld [vmem:[%s3 + $0x50] sm:$0xff]
    %v236 = vld [vmem:[%s3 + $0x58] sm:$0xff]
    %v237 = vld [vmem:[%s3 + $0x60] sm:$0xff]
    %v238 = vld [vmem:[%s3 + $0x68] sm:$0xff]
    %v239 = vld [vmem:[%s3 + $0x70] sm:$0xff]
    %v240 = vld [vmem:[%s3 + $0x78] sm:$0xff]
    %v241 = vlaneseq
    %v242 = vshrl.u32 %v241, 7
    %v243 = vsub.s32 0, %v242
    %v244 = vrot.slane %v52, %v243
    %245 = vmatprep.subr.mxu0 0.0
    %246 = vmatpush1.msra.mxu0 %v240
    %247 = vmatprep.subr.mxu0 0.0
    %248 = vmatpush1.msra.mxu0 %v239
    %249 = vmatprep.subr.mxu0 0.0
    %250 = vmatpush1.msra.mxu0 %v238
    %251 = vmatprep.subr.mxu0 0.0
    %252 = vmatpush1.msra.mxu0 %v237
    %253 = vmatprep.subr.mxu0 0.0
    %254 = vmatpush1.msra.mxu0 %v236
    %255 = vmatprep.subr.mxu0 0.0
    %256 = vmatpush1.msra.mxu0 %v235
    %257 = vmatprep.subr.mxu0 0.0
    %258 = vmatpush1.msra.mxu0 %v234
    %259 = vmatprep.subr.mxu0 0.0
    %260 = vmatpush1.msra.mxu0 %v233
    %261 = vmatprep.subr.mxu0 0.0
    %262 = vmatpush1.msra.mxu0 %v232
    %263 = vmatprep.subr.mxu0 0.0
    %264 = vmatpush1.msra.mxu0 %v231
    %265 = vmatprep.subr.mxu0 0.0
    %266 = vmatpush1.msra.mxu0 %v230
    %267 = vmatprep.subr.mxu0 0.0
    %268 = vmatpush1.msra.mxu0 %v229
    %269 = vmatprep.subr.mxu0 0.0
    %270 = vmatpush1.msra.mxu0 %v228
    %271 = vmatprep.subr.mxu0 0.0
    %272 = vmatpush1.msra.mxu0 %v227
    %273 = vmatprep.subr.mxu0 0.0
    %274 = vmatpush1.msra.mxu0 %v226
    %275 = vmatprep.subr.mxu0 0.0
    %276 = vmatpush1.msra.mxu0 %v225
    %277 = vmatprep.subr.mxu0 0.0
    %278 = vmatpush2.msra.mxu0 0.0
    %279 = vmatprep.subr.mxu0 0.0
    %280 = vmatpush2.msra.mxu0 0.0
    %281 = vmatprep.subr.mxu0 0.0
    %282 = vmatpush2.msra.mxu0 0.0
    %283 = vmatprep.subr.mxu0 0.0
    %284 = vmatpush2.msra.mxu0 0.0
    %285 = vmatprep.subr.mxu0 0.0
    %286 = vmatpush2.msra.mxu0 0.0
    %287 = vmatprep.subr.mxu0 0.0
    %288 = vmatpush2.msra.mxu0 0.0
    %289 = vmatprep.subr.mxu0 0.0
    %290 = vmatpush2.msra.mxu0 0.0
    %291 = vmatprep.subr.mxu0 0.0
    %292 = vmatpush2.msra.mxu0 0.0
    %293 = vmatprep.subr.mxu0 0.0
    %294 = vmatpush2.msra.mxu0 0.0
    %295 = vmatprep.subr.mxu0 0.0
    %296 = vmatpush2.msra.mxu0 0.0
    %297 = vmatprep.subr.mxu0 0.0
    %298 = vmatpush2.msra.mxu0 0.0
    %299 = vmatprep.subr.mxu0 0.0
    %300 = vmatpush2.msra.mxu0 0.0
    %301 = vmatprep.subr.mxu0 0.0
    %302 = vmatpush2.msra.mxu0 0.0
    %303 = vmatprep.subr.mxu0 0.0
    %304 = vmatpush2.msra.mxu0 0.0
    %305 = vmatprep.subr.mxu0 0.0
    %306 = vmatpush2.msra.mxu0 0.0
    %307 = vmatprep.subr.mxu0 0.0
    %308 = vmatpush2.msra.mxu0 0.0
    %309 = vmatprep.mubr.f32.mxu0 0.0
    %310 = vmatmul.mubr.f32.gmra.mxu0 %v224
    %v311 = vpop.f32.mrf.mxu0
    %v312 = vadd.f32 %v244, %v311
    %v313 = vpop.f32.mrf.mxu0
    %314 = vdwg.mxu0
    %v315 = vtanh.pop %v312
    %v316 = vsub.f32 %v315, %v312
    %v317 = vlaneseq
    %v318 = vshrl.u32 %v317, 7
    %v319 = vsub.s32 1, %v318
    %v320 = vrot.slane %v52, %v319
    %v321 = vmul.f32 %v320, %v316
    %v322 = vadd.f32 %v312, %v321
    %vm323 = vcmask 64512
    %324 = vst.msk [vmem:[#allocation7] sm:$0xff] %vm323, %v322
    // Predicated region
    $region34: #{tpu_custom_call.1} parent=1 // pred_check
      _
    $region35: #{tpu_custom_call.1} parent=1 // pred_check_branch
      %326 = sbr.rel (0) target = $region37
    $region36: #{tpu_custom_call.1} parent=1 // pred_region
      %s328 = ssub.s32 128, 128
      %329 = vsyncadd [#allocation4], %s328
      %s331 = sshll.u32 [#allocation7], 4
      %s332 = int_to_ptr.vmem [resolvable:$true] %s331
      %334 = dma.vmem_to_hbm [thread:$0]  %s332, 128, %s6, [#allocation4]
    $region37: #{tpu_custom_call.1} parent=1 // pred_fallthru
      _
    // Predicated region
    $region38: #{tpu_custom_call.1} parent=1 // pred_check
      _
    $region39: #{tpu_custom_call.1} parent=1 // pred_check_branch
      %336 = sbr.rel (0) target = $region41
    $region40: #{tpu_custom_call.1} parent=1 // pred_region
      %337 = dma.done [#allocation4], 128
    $region41: #{tpu_custom_call.1} parent=1 // pred_fallthru
      _
    %338 = vsyncpa [#allocation3], 1
    %339 = vsyncpa [#allocation6], 1
    %340 = vsyncpa [#allocation4], 1

</llo_original>
